<compile_context>
chip_gen: v5e
topology: v5e:2x2
jax: 0.10.0
libtpu: 0.0.40
codegen_flags: <defaults>
</compile_context>

<pallas_src>
import jax
import jax.numpy as jnp
from jax.experimental import pallas as pl
from jax.experimental.pallas import tpu as pltpu

# logical dims of the torch module
D_IN, D_H1, D_H2, D_OUT = 41, 150, 46, 2
# lane-aligned padded hidden dims (zero-padding is inert under Linear+ReLU)
P_H1, P_H2 = 256, 128
_MIN_TILE = 16  # bf16 sublane packing


def _round_up(n, m):
    return ((n + m - 1) // m) * m


def _mlp_kernel(x_ref, w1_ref, b1_ref, w2_ref, b2_ref, w3t_ref, b3_ref, o_ref):
    # Cast the (tm, 41) x tile to the matmul dtype here (VPU, hidden by the
    # pipeline) instead of as a separate XLA pass in the wrapper.
    x = x_ref[...].astype(w1_ref.dtype)
    # fc1 + ReLU  (MXU, f32 accumulation; bias/ReLU in f32 on the VPU)
    h1 = jnp.dot(x, w1_ref[...], preferred_element_type=jnp.float32)
    h1 = jnp.maximum(h1 + b1_ref[...], 0.0)
    # fc2 + ReLU  (MXU)
    h2 = jnp.dot(h1.astype(w2_ref.dtype), w2_ref[...],
                 preferred_element_type=jnp.float32)
    h2 = jnp.maximum(h2 + b2_ref[...], 0.0)
    # fc3: K=128, N=2 -> off the MXU.  Each output column is a VPU multiply
    # with a lane-dense row of w3^T followed by a lane reduction (XLU), both
    # units have slack here; saves a full (mostly wasted) MXU pass.
    w3t = w3t_ref[...]            # (D_OUT, P_H2) f32
    b3 = b3_ref[...]              # (1, D_OUT)    f32
    for j in range(D_OUT):
        col = jnp.sum(h2 * w3t[j:j + 1, :], axis=-1, keepdims=True) + b3[:, j:j + 1]
        o_ref[:, j:j + 1] = col.astype(o_ref.dtype)


def init_params(key):
    """Deterministic init mirroring torch.nn.Linear (uniform +-1/sqrt(fan_in))."""
    ks = jax.random.split(key, 6)

    def linear(kw, kb, fan_in, fan_out):
        bound = 1.0 / jnp.sqrt(fan_in)
        w = jax.random.uniform(kw, (fan_in, fan_out), jnp.float32, -bound, bound)
        b = jax.random.uniform(kb, (fan_out,), jnp.float32, -bound, bound)
        return w, b

    w1, b1 = linear(ks[0], ks[1], D_IN, D_H1)
    w2, b2 = linear(ks[2], ks[3], D_H1, D_H2)
    w3, b3 = linear(ks[4], ks[5], D_H2, D_OUT)
    return (w1, b1, w2, b2, w3, b3)


def prepare_params(params, dtype=jnp.bfloat16):
    """Pad hidden dims to lane multiples ONCE (not per forward).  fc1/fc2
    weights are cast to `dtype` (bf16 for the MXU; pass jnp.float32 for exact
    f32 math).  fc3 runs on the VPU, so it is kept f32 and stored transposed
    (D_OUT, P_H2) so each output column is a lane-dense row broadcast.
    Biases stay f32."""
    w1, b1, w2, b2, w3, b3 = params

    def pad_to(a, shape):
        return jnp.pad(a, [(0, t - s) for s, t in zip(a.shape, shape)])

    w1p = pad_to(w1, (D_IN, P_H1)).astype(dtype)
    b1p = pad_to(b1.reshape(1, -1), (1, P_H1)).astype(jnp.float32)
    w2p = pad_to(w2, (P_H1, P_H2)).astype(dtype)
    b2p = pad_to(b2.reshape(1, -1), (1, P_H2)).astype(jnp.float32)
    w3tp = pad_to(w3, (P_H2, D_OUT)).T.astype(jnp.float32)   # (D_OUT, P_H2)
    b3p = b3.reshape(1, -1).astype(jnp.float32)
    return (w1p, b1p, w2p, b2p, w3tp, b3p)


def neural_network_forward(x, padded_params, *, tile_m=512):
    """x: (B, 41) float32.  Returns (B, 2) float32."""
    w1p, b1p, w2p, b2p, w3tp, b3p = padded_params
    B = x.shape[0]

    # Balanced batch tiling: choose the number of tiles first, then the tile
    # size (multiple of 16), so batch-edge padding is at most one rounding
    # (e.g. 300 -> 320, not 300 -> 512).  Keep >=2 tiles when B is big enough
    # so v7x's two TensorCores both get a balanced share of the grid.
    n = pl.cdiv(B, tile_m)
    if n < 2 and B >= 2 * _MIN_TILE:
        n = 2
    tm = _round_up(pl.cdiv(B, n), _MIN_TILE)
    n = pl.cdiv(B, tm)
    Bp = n * tm

    if Bp != B:
        x = jnp.pad(x, ((0, Bp - B), (0, 0)))   # tiny: <= tm-1 garbage rows

    const = lambda i: (0, 0)
    out = pl.pallas_call(
        _mlp_kernel,
        out_shape=jax.ShapeDtypeStruct((Bp, D_OUT), jnp.float32),
        grid=(n,),
        in_specs=[
            pl.BlockSpec((tm, D_IN), lambda i: (i, 0)),   # x: tiled over batch
            pl.BlockSpec((D_IN, P_H1), const),            # weights/biases resident
            pl.BlockSpec((1, P_H1), const),
            pl.BlockSpec((P_H1, P_H2), const),
            pl.BlockSpec((1, P_H2), const),
            pl.BlockSpec((D_OUT, P_H2), const),
            pl.BlockSpec((1, D_OUT), const),
        ],
        out_specs=pl.BlockSpec((tm, D_OUT), lambda i: (i, 0)),
        compiler_params=pltpu.CompilerParams(
            dimension_semantics=("parallel",)),           # v7x: 2 TCs share batch
    )(x, w1p, b1p, w2p, b2p, w3tp, b3p)

    return out if Bp == B else out[:B]


def _reference(x, params):
    w1, b1, w2, b2, w3, b3 = params
    h1 = jnp.maximum(x @ w1 + b1, 0.0)
    h2 = jnp.maximum(h1 @ w2 + b2, 0.0)
    return h2 @ w3 + b3


def _reference_bf16(x, params):
    """Matches the kernel's bf16-operand path: bf16 matmul operands for
    fc1/fc2 with f32 accumulation, fc3 in f32."""
    w1, b1, w2, b2, w3, b3 = params
    r = lambda a: a.astype(jnp.bfloat16).astype(jnp.float32)
    h1 = jnp.maximum(r(x) @ r(w1) + b1, 0.0)
    h2 = jnp.maximum(r(h1) @ r(w2) + b2, 0.0)
    return h2 @ w3 + b3


if __name__ == "__main__":
    key = jax.random.PRNGKey(0)
    k_params, k_x1, k_x2 = jax.random.split(key, 3)
    params = init_params(k_params)

    # exact f32-operand path (single tile, ragged batch edge 8 -> 16)
    params_f32 = prepare_params(params, dtype=jnp.float32)
    x_small = jax.random.normal(k_x1, (8, D_IN), jnp.float32)
    y_small = jax.block_until_ready(neural_network_forward(x_small, params_f32))
    assert y_small.shape == (8, D_OUT)
    assert jnp.allclose(y_small, _reference(x_small, params), atol=1e-5, rtol=1e-5)

    # fast bf16-operand path, multi-tile grid (300 -> 2 x 160) + batch padding
    params_bf16 = prepare_params(params, dtype=jnp.bfloat16)
    x_big = jax.random.normal(k_x2, (300, D_IN), jnp.float32)
    y_big = jax.block_until_ready(neural_network_forward(x_big, params_bf16))
    assert y_big.shape == (300, D_OUT)
    # tight check against a bf16-rounded-operand reference ...
    assert jnp.allclose(y_big, _reference_bf16(x_big, params), atol=1e-2, rtol=1e-2)
    # ... and a loose sanity check against the full-f32 reference
    assert jnp.allclose(y_big, _reference(x_big, params), atol=1e-1, rtol=1e-1)

    print("KERNEL_OK")
</pallas_src>

<mosaic_0001>
module attributes {stable_mosaic.version = 11 : i64} {
  func.func @_mlp_kernel(%arg0: i32, %arg1: memref<16x41xf32, #tpu.memory_space<vmem>>, %arg2: memref<41x256xf32, #tpu.memory_space<vmem>>, %arg3: memref<1x256xf32, #tpu.memory_space<vmem>>, %arg4: memref<256x128xf32, #tpu.memory_space<vmem>>, %arg5: memref<1x128xf32, #tpu.memory_space<vmem>>, %arg6: memref<2x128xf32, #tpu.memory_space<vmem>>, %arg7: memref<1x2xf32, #tpu.memory_space<vmem>>, %arg8: memref<16x2xf32, #tpu.memory_space<vmem>>) attributes {dimension_semantics = [#tpu.dimension_semantics<parallel>], iteration_bounds = array<i64: 1>, scalar_prefetch = 0 : i64, scratch_operands = 0 : i64, tpu.core_type = #tpu.core_type<tc>, window_params = [{transform_indices = @transform_0, window_bounds = array<i64: 16, 41>}, {pipeline_mode = #tpu.pipeline_mode<synchronous>, transform_indices = @transform_1, window_bounds = array<i64: 41, 256>}, {pipeline_mode = #tpu.pipeline_mode<synchronous>, transform_indices = @transform_2, window_bounds = array<i64: 1, 256>}, {pipeline_mode = #tpu.pipeline_mode<synchronous>, transform_indices = @transform_3, window_bounds = array<i64: 256, 128>}, {pipeline_mode = #tpu.pipeline_mode<synchronous>, transform_indices = @transform_4, window_bounds = array<i64: 1, 128>}, {pipeline_mode = #tpu.pipeline_mode<synchronous>, transform_indices = @transform_5, window_bounds = array<i64: 2, 128>}, {pipeline_mode = #tpu.pipeline_mode<synchronous>, transform_indices = @transform_6, window_bounds = array<i64: 1, 2>}, {transform_indices = @transform_7, window_bounds = array<i64: 16, 2>}]} {
    %c0 = arith.constant 0 : index
    %c0_0 = arith.constant 0 : index
    %0 = vector.load %arg1[%c0, %c0_0] : memref<16x41xf32, #tpu.memory_space<vmem>>, vector<16x41xf32>
    %c0_1 = arith.constant 0 : index
    %c0_2 = arith.constant 0 : index
    %1 = vector.load %arg2[%c0_1, %c0_2] : memref<41x256xf32, #tpu.memory_space<vmem>>, vector<41x256xf32>
    %cst = arith.constant dense<0.000000e+00> : vector<16x256xf32>
    %2 = tpu.matmul %0, %1, %cst {dimension_numbers = #tpu.dot_dimension_numbers<[1], [0], [0], [1], [0, 0, 1, 1], [], []>} : vector<16x41xf32>, vector<41x256xf32>, vector<16x256xf32> -> vector<16x256xf32>
    %c0_3 = arith.constant 0 : index
    %c0_4 = arith.constant 0 : index
    %3 = vector.load %arg3[%c0_3, %c0_4] : memref<1x256xf32, #tpu.memory_space<vmem>>, vector<1x256xf32>
    %4 = vector.broadcast %3 : vector<1x256xf32> to vector<16x256xf32>
    %5 = arith.addf %2, %4 : vector<16x256xf32>
    %cst_5 = arith.constant 0.000000e+00 : f32
    %6 = vector.broadcast %cst_5 : f32 to vector<16x256xf32>
    %7 = arith.maximumf %5, %6 : vector<16x256xf32>
    %c0_6 = arith.constant 0 : index
    %c0_7 = arith.constant 0 : index
    %8 = vector.load %arg4[%c0_6, %c0_7] : memref<256x128xf32, #tpu.memory_space<vmem>>, vector<256x128xf32>
    %cst_8 = arith.constant dense<0.000000e+00> : vector<16x128xf32>
    %9 = tpu.matmul %7, %8, %cst_8 {dimension_numbers = #tpu.dot_dimension_numbers<[1], [0], [0], [1], [0, 0, 1, 1], [], []>} : vector<16x256xf32>, vector<256x128xf32>, vector<16x128xf32> -> vector<16x128xf32>
    %c0_9 = arith.constant 0 : index
    %c0_10 = arith.constant 0 : index
    %10 = vector.load %arg5[%c0_9, %c0_10] : memref<1x128xf32, #tpu.memory_space<vmem>>, vector<1x128xf32>
    %11 = vector.broadcast %10 : vector<1x128xf32> to vector<16x128xf32>
    %12 = arith.addf %9, %11 : vector<16x128xf32>
    %cst_11 = arith.constant 0.000000e+00 : f32
    %13 = vector.broadcast %cst_11 : f32 to vector<16x128xf32>
    %14 = arith.maximumf %12, %13 : vector<16x128xf32>
    %c0_12 = arith.constant 0 : index
    %c0_13 = arith.constant 0 : index
    %15 = vector.load %arg6[%c0_12, %c0_13] : memref<2x128xf32, #tpu.memory_space<vmem>>, vector<2x128xf32>
    %c0_14 = arith.constant 0 : index
    %c0_15 = arith.constant 0 : index
    %16 = vector.load %arg7[%c0_14, %c0_15] : memref<1x2xf32, #tpu.memory_space<vmem>>, vector<1x2xf32>
    %17 = vector.extract_strided_slice %15 {offsets = [0, 0], sizes = [1, 128], strides = [1, 1]} : vector<2x128xf32> to vector<1x128xf32>
    %18 = vector.broadcast %17 : vector<1x128xf32> to vector<16x128xf32>
    %19 = arith.mulf %14, %18 : vector<16x128xf32>
    %cst_16 = arith.constant dense<0.000000e+00> : vector<16xf32>
    %20 = vector.multi_reduction <add>, %19, %cst_16 [1] : vector<16x128xf32> to vector<16xf32>
    %21 = vector.shape_cast %20 : vector<16xf32> to vector<16x1xf32>
    %22 = vector.extract_strided_slice %16 {offsets = [0, 0], sizes = [1, 1], strides = [1, 1]} : vector<1x2xf32> to vector<1x1xf32>
    %23 = vector.broadcast %22 : vector<1x1xf32> to vector<16x1xf32>
    %24 = arith.addf %21, %23 : vector<16x1xf32>
    %c0_17 = arith.constant 0 : index
    %c0_18 = arith.constant 0 : index
    %25 = vector.load %arg8[%c0_17, %c0_18] : memref<16x2xf32, #tpu.memory_space<vmem>>, vector<16x1xf32>
    tpu.vector_store %arg8[%c0_17, %c0_18], %24 {strides = array<i32>} : memref<16x2xf32, #tpu.memory_space<vmem>>, vector<16x1xf32>,
    %26 = vector.extract_strided_slice %15 {offsets = [1, 0], sizes = [1, 128], strides = [1, 1]} : vector<2x128xf32> to vector<1x128xf32>
    %27 = vector.broadcast %26 : vector<1x128xf32> to vector<16x128xf32>
    %28 = arith.mulf %14, %27 : vector<16x128xf32>
    %cst_19 = arith.constant dense<0.000000e+00> : vector<16xf32>
    %29 = vector.multi_reduction <add>, %28, %cst_19 [1] : vector<16x128xf32> to vector<16xf32>
    %30 = vector.shape_cast %29 : vector<16xf32> to vector<16x1xf32>
    %31 = vector.extract_strided_slice %16 {offsets = [0, 1], sizes = [1, 1], strides = [1, 1]} : vector<1x2xf32> to vector<1x1xf32>
    %32 = vector.broadcast %31 : vector<1x1xf32> to vector<16x1xf32>
    %33 = arith.addf %30, %32 : vector<16x1xf32>
    %c0_20 = arith.constant 0 : index
    %c1 = arith.constant 1 : index
    %34 = vector.load %arg8[%c0_20, %c1] : memref<16x2xf32, #tpu.memory_space<vmem>>, vector<16x1xf32>
    tpu.vector_store %arg8[%c0_20, %c1], %33 {strides = array<i32>} : memref<16x2xf32, #tpu.memory_space<vmem>>, vector<16x1xf32>,
    return
  }
  func.func @transform_0(%arg0: i32) -> (i32, i32) {
    %c0_i32 = arith.constant 0 : i32
    %c0_i32_0 = arith.constant 0 : i32
    return %arg0, %c0_i32 : i32, i32
  }
  func.func @transform_1(%arg0: i32) -> (i32, i32) {
    %c0_i32 = arith.constant 0 : i32
    %c0_i32_0 = arith.constant 0 : i32
    %c0_i32_1 = arith.constant 0 : i32
    return %c0_i32, %c0_i32_0 : i32, i32
  }
  func.func @transform_2(%arg0: i32) -> (i32, i32) {
    %c0_i32 = arith.constant 0 : i32
    %c0_i32_0 = arith.constant 0 : i32
    %c0_i32_1 = arith.constant 0 : i32
    return %c0_i32, %c0_i32_0 : i32, i32
  }
  func.func @transform_3(%arg0: i32) -> (i32, i32) {
    %c0_i32 = arith.constant 0 : i32
    %c0_i32_0 = arith.constant 0 : i32
    %c0_i32_1 = arith.constant 0 : i32
    return %c0_i32, %c0_i32_0 : i32, i32
  }
  func.func @transform_4(%arg0: i32) -> (i32, i32) {
    %c0_i32 = arith.constant 0 : i32
    %c0_i32_0 = arith.constant 0 : i32
    %c0_i32_1 = arith.constant 0 : i32
    return %c0_i32, %c0_i32_0 : i32, i32
  }
  func.func @transform_5(%arg0: i32) -> (i32, i32) {
    %c0_i32 = arith.constant 0 : i32
    %c0_i32_0 = arith.constant 0 : i32
    %c0_i32_1 = arith.constant 0 : i32
    return %c0_i32, %c0_i32_0 : i32, i32
  }
  func.func @transform_6(%arg0: i32) -> (i32, i32) {
    %c0_i32 = arith.constant 0 : i32
    %c0_i32_0 = arith.constant 0 : i32
    %c0_i32_1 = arith.constant 0 : i32
    return %c0_i32, %c0_i32_0 : i32, i32
  }
  func.func @transform_7(%arg0: i32) -> (i32, i32) {
    %c0_i32 = arith.constant 0 : i32
    %c0_i32_0 = arith.constant 0 : i32
    return %arg0, %c0_i32 : i32, i32
  }
}

</mosaic_0001>

<llo_original>
// kernel: tpu_custom_call.1
$region0: #{tpu_custom_call.1}
  #allocation0 [shape = 'u32[]', space=smem, size = 0x4, offset = 0x4, fixed_abs, tag = 'smem constant byte address 0x4 - core index']
  #allocation1 [shape = 'u32[72,128]{1,0:T(1,128)}', space=vmem, size = 0x9000, scoped, tag = 'internal scratch']
  %s0 = inlined_call_operand.hbm [shape: f32[16,41], index: 0, kind: input, shape index: {}]
  %s1 = inlined_call_operand.hbm [shape: f32[41,256], index: 1, kind: input, shape index: {}]
  %s2 = inlined_call_operand.hbm [shape: f32[1,256], index: 2, kind: input, shape index: {}]
  %s3 = inlined_call_operand.hbm [shape: f32[256,128], index: 3, kind: input, shape index: {}]
  %s4 = inlined_call_operand.vmem [shape: f32[1,128], index: 4, kind: input, shape index: {}]
  %s5 = inlined_call_operand.vmem [shape: f32[2,128], index: 5, kind: input, shape index: {}]
  %s6 = inlined_call_operand.vmem [shape: f32[1,2], index: 6, kind: input, shape index: {}]
  %s7 = inlined_call_operand.vmem [shape: f32[16,2], index: 7, kind: output, shape index: {}]
  %s8 = sld [smem:[#allocation0]]
  $region54: #{tpu_custom_call.1} parent=0
    _
  %s10 = ssub.s32 1, %s8
  %s11 = scalar_select 0, %s10, %s8
  $region1: #{tpu_custom_call.1} parent=0
    #allocation2 [shape = 'u8[8192]{0}', space=vmem, size = 0x2000, scoped, tag = 'input window, operand 0, single buffered']
    #allocation3 [shape = 's32[1]{0}', space=sflag, size = 0x4, scoped, tag = 'scoped memory for tpu_custom_call.1']
    #allocation4 [shape = 'u8[49152]{0}', space=vmem, size = 0xc000, scoped, tag = 'input window, operand 1, single buffered']
    #allocation5 [shape = 's32[1]{0}', space=sflag, size = 0x4, scoped, tag = 'scoped memory for tpu_custom_call.1']
    #allocation6 [shape = 'u8[1024]{0}', space=vmem, size = 0x400, scoped, tag = 'input window, operand 2, single buffered']
    #allocation7 [shape = 'u8[131072]{0}', space=vmem, size = 0x20000, scoped, tag = 'input window, operand 3, single buffered']
    #allocation8 [shape = 's32[1]{0}', space=sflag, size = 0x4, scoped, tag = 'scoped memory for tpu_custom_call.1']
    %12 = vsyncpa [#allocation3], 0
    %13 = vsyncpa [#allocation5], 0
    %14 = vsyncpa [#allocation8], 0
    // Predicated region
    $region2: #{tpu_custom_call.1} parent=1 // pred_check
      _
    $region3: #{tpu_custom_call.1} parent=1 // pred_check_branch
      %16 = sbr.rel (0) target = $region5
    $region4: #{tpu_custom_call.1} parent=1 // pred_region
      %18 = vsyncadd [#allocation3], 0
      %s19 = sshll.u32 %s0, 4
      %s20 = int_to_ptr.hbm [resolvable:$true] %s19
      %s21 = sshll.u32 [#allocation2], 4
      %s22 = int_to_ptr.vmem [resolvable:$true] %s21
      %27 = dma.hbm_to_vmem [thread:$0]  %s20, 256, %s22, [#allocation3], 128, 128, 8
    $region5: #{tpu_custom_call.1} parent=1 // pred_fallthru
      _
    // Predicated region
    $region6: #{tpu_custom_call.1} parent=1 // pred_check
      _
    $region7: #{tpu_custom_call.1} parent=1 // pred_check_branch
      %29 = sbr.rel (0) target = $region9
    $region8: #{tpu_custom_call.1} parent=1 // pred_region
      %31 = vsyncadd [#allocation5], 0
      %s32 = sshll.u32 %s1, 4
      %s33 = int_to_ptr.hbm [resolvable:$true] %s32
      %s34 = sshll.u32 [#allocation4], 4
      %s35 = int_to_ptr.vmem [resolvable:$true] %s34
      %40 = dma.hbm_to_vmem [thread:$0]  %s33, 1536, %s35, [#allocation5], 256, 256, 16
    $region9: #{tpu_custom_call.1} parent=1 // pred_fallthru
      _
    // Predicated region
    $region10: #{tpu_custom_call.1} parent=1 // pred_check
      _
    $region11: #{tpu_custom_call.1} parent=1 // pred_check_branch
      %42 = sbr.rel (0) target = $region13
    $region12: #{tpu_custom_call.1} parent=1 // pred_region
      %44 = vsyncadd [#allocation5], 0
      %s46 = sshll.u32 %s2, 4
      %s47 = int_to_ptr.hbm [resolvable:$true] %s46
      %s48 = sshll.u32 [#allocation6], 4
      %s49 = int_to_ptr.vmem [resolvable:$true] %s48
      %51 = dma.hbm_to_vmem [thread:$0]  %s47, 32, %s49, [#allocation5]
    $region13: #{tpu_custom_call.1} parent=1 // pred_fallthru
      _
    // Predicated region
    $region14: #{tpu_custom_call.1} parent=1 // pred_check
      _
    $region15: #{tpu_custom_call.1} parent=1 // pred_check_branch
      %53 = sbr.rel (0) target = $region17
    $region16: #{tpu_custom_call.1} parent=1 // pred_region
      %55 = vsyncadd [#allocation8], 0
      %s56 = sshll.u32 %s3, 4
      %s57 = int_to_ptr.hbm [resolvable:$true] %s56
      %s58 = sshll.u32 [#allocation7], 4
      %s59 = int_to_ptr.vmem [resolvable:$true] %s58
      %64 = dma.hbm_to_vmem [thread:$0]  %s57, 4096, %s59, [#allocation8], 128, 128, 8
    $region17: #{tpu_custom_call.1} parent=1 // pred_fallthru
      _
    // Predicated region
    $region18: #{tpu_custom_call.1} parent=1 // pred_check
      _
    $region19: #{tpu_custom_call.1} parent=1 // pred_check_branch
      %66 = sbr.rel (0) target = $region21
    $region20: #{tpu_custom_call.1} parent=1 // pred_region
      _
    $region21: #{tpu_custom_call.1} parent=1 // pred_fallthru
      _
    // Predicated region
    $region22: #{tpu_custom_call.1} parent=1 // pred_check
      _
    $region23: #{tpu_custom_call.1} parent=1 // pred_check_branch
      %68 = sbr.rel (0) target = $region25
    $region24: #{tpu_custom_call.1} parent=1 // pred_region
      _
    $region25: #{tpu_custom_call.1} parent=1 // pred_fallthru
      _
    // Predicated region
    $region26: #{tpu_custom_call.1} parent=1 // pred_check
      _
    $region27: #{tpu_custom_call.1} parent=1 // pred_check_branch
      %70 = sbr.rel (0) target = $region29
    $region28: #{tpu_custom_call.1} parent=1 // pred_region
      _
    $region29: #{tpu_custom_call.1} parent=1 // pred_fallthru
      _
    // Predicated region
    $region30: #{tpu_custom_call.1} parent=1 // pred_check
      _
    $region31: #{tpu_custom_call.1} parent=1 // pred_check_branch
      %72 = sbr.rel (0) target = $region33
    $region32: #{tpu_custom_call.1} parent=1 // pred_region
      %74 = dma.done [#allocation3], 256
    $region33: #{tpu_custom_call.1} parent=1 // pred_fallthru
      _
    // Predicated region
    $region34: #{tpu_custom_call.1} parent=1 // pred_check
      _
    $region35: #{tpu_custom_call.1} parent=1 // pred_check_branch
      %76 = sbr.rel (0) target = $region37
    $region36: #{tpu_custom_call.1} parent=1 // pred_region
      %78 = dma.done [#allocation5], 1536
    $region37: #{tpu_custom_call.1} parent=1 // pred_fallthru
      _
    // Predicated region
    $region38: #{tpu_custom_call.1} parent=1 // pred_check
      _
    $region39: #{tpu_custom_call.1} parent=1 // pred_check_branch
      %80 = sbr.rel (0) target = $region41
    $region40: #{tpu_custom_call.1} parent=1 // pred_region
      %82 = dma.done [#allocation5], 32
    $region41: #{tpu_custom_call.1} parent=1 // pred_fallthru
      _
    // Predicated region
    $region42: #{tpu_custom_call.1} parent=1 // pred_check
      _
    $region43: #{tpu_custom_call.1} parent=1 // pred_check_branch
      %84 = sbr.rel (0) target = $region45
    $region44: #{tpu_custom_call.1} parent=1 // pred_region
      %86 = dma.done [#allocation8], 4096
    $region45: #{tpu_custom_call.1} parent=1 // pred_fallthru
      _
    %v87 = vld [vmem:[#allocation2] sm:$0xff]
    %v88 = vld [vmem:[#allocation2 + $0x8] sm:$0xff]
    %v89 = vld [vmem:[#allocation4] sm:$0xff]
    %v90 = vld [vmem:[#allocation4 + $0x8] sm:$0xff]
    %v91 = vld [vmem:[#allocation4 + $0x10] sm:$0xff]
    %v92 = vld [vmem:[#allocation4 + $0x18] sm:$0xff]
    %v93 = vld [vmem:[#allocation4 + $0x20] sm:$0xff]
    %v94 = vld [vmem:[#allocation4 + $0x28] sm:$0xff]
    %v95 = vld [vmem:[#allocation4 + $0x30] sm:$0xff]
    %v96 = vld [vmem:[#allocation4 + $0x38] sm:$0xff]
    %v97 = vld [vmem:[#allocation4 + $0x40] sm:$0xff]
    %v98 = vld [vmem:[#allocation4 + $0x48] sm:$0xff]
    %v99 = vld [vmem:[#allocation4 + $0x50] sm:$0x1]
    %v100 = vld [vmem:[#allocation4 + $0x58] sm:$0x1]
    %v101 = vld [vmem:[#allocation6] sm:$0x3]
    %v103 = vperm.slane %v101, 0
    %v104 = vperm.slane %v101, 1
    %vm107 = vcmask 334848
    %v109 = vsel %vm107, %v87, 0
    %v112 = vsel %vm107, %v88, 0
    %vm114 = vcmask 1040384
    %v116 = vsel %vm114, %v99, 0
    %v119 = vsel %vm114, %v100, 0
    %121 = vmatpush.msra.mxu0 0.0
    %122 = vmatpush.msra.mxu0 0.0
    %123 = vmatpush.msra.mxu0 0.0
    %124 = vmatpush.msra.mxu0 0.0
    %125 = vmatpush.msra.mxu0 0.0
    %126 = vmatpush.msra.mxu0 0.0
    %127 = vmatpush.msra.mxu0 0.0
    %128 = vmatpush.msra.mxu0 0.0
    %129 = vmatpush.msra.mxu0 0.0
    %130 = vmatpush.msra.mxu0 0.0
    %131 = vmatpush.msra.mxu0 %v116
    %132 = vmatpush.msra.mxu0 %v97
    %133 = vmatpush.msra.mxu0 %v95
    %134 = vmatpush.msra.mxu0 %v93
    %135 = vmatpush.msra.mxu0 %v91
    %136 = vmatpush.msra.mxu0 %v89
    %137 = vmatmul.f32.gmra.mxu0 %v109
    %v138 = vpop.f32.mrf.mxu0
    %v139 = vadd.f32 %v103, %v138
    %140 = vmatmul.f32.gmra.mxu0 %v112
    %v141 = vpop.f32.mrf.mxu0
    %v142 = vadd.f32 %v103, %v141
    %143 = vdwg.mxu0
    %144 = vmatpush.msra.mxu0 0.0
    %145 = vmatpush.msra.mxu0 0.0
    %146 = vmatpush.msra.mxu0 0.0
    %147 = vmatpush.msra.mxu0 0.0
    %148 = vmatpush.msra.mxu0 0.0
    %149 = vmatpush.msra.mxu0 0.0
    %150 = vmatpush.msra.mxu0 0.0
    %151 = vmatpush.msra.mxu0 0.0
    %152 = vmatpush.msra.mxu0 0.0
    %153 = vmatpush.msra.mxu0 0.0
    %154 = vmatpush.msra.mxu0 %v119
    %155 = vmatpush.msra.mxu0 %v98
    %156 = vmatpush.msra.mxu0 %v96
    %157 = vmatpush.msra.mxu0 %v94
    %158 = vmatpush.msra.mxu0 %v92
    %159 = vmatpush.msra.mxu0 %v90
    %160 = vmatmul.f32.gmra.mxu0 %v109
    %v161 = vpop.f32.mrf.mxu0
    %v162 = vadd.f32 %v104, %v161
    %163 = vmatmul.f32.gmra.mxu0 %v112
    %v164 = vpop.f32.mrf.mxu0
    %v165 = vadd.f32 %v104, %v164
    %166 = vdwg.mxu0
    %v167 = vmax.f32 %v139, 0.0
    %v168 = vmax.f32 %v162, 0.0
    %v169 = vmax.f32 %v142, 0.0
    %v170 = vmax.f32 %v165, 0.0
    %v171 = vld [vmem:[#allocation7] sm:$0xff]
    %v172 = vld [vmem:[#allocation7 + $0x8] sm:$0xff]
    %v173 = vld [vmem:[#allocation7 + $0x10] sm:$0xff]
    %v174 = vld [vmem:[#allocation7 + $0x18] sm:$0xff]
    %v175 = vld [vmem:[#allocation7 + $0x20] sm:$0xff]
    %v176 = vld [vmem:[#allocation7 + $0x28] sm:$0xff]
    %v177 = vld [vmem:[#allocation7 + $0x30] sm:$0xff]
    %v178 = vld [vmem:[#allocation7 + $0x38] sm:$0xff]
    %v179 = vld [vmem:[#allocation7 + $0x40] sm:$0xff]
    %v180 = vld [vmem:[#allocation7 + $0x48] sm:$0xff]
    %v181 = vld [vmem:[#allocation7 + $0x50] sm:$0xff]
    %v182 = vld [vmem:[#allocation7 + $0x58] sm:$0xff]
    %v183 = vld [vmem:[#allocation7 + $0x60] sm:$0xff]
    %v184 = vld [vmem:[#allocation7 + $0x68] sm:$0xff]
    %v185 = vld [vmem:[#allocation7 + $0x70] sm:$0xff]
    %v186 = vld [vmem:[#allocation7 + $0x78] sm:$0xff]
    %v187 = vld [vmem:[#allocation7 + $0x80] sm:$0xff]
    %v188 = vld [vmem:[#allocation7 + $0x88] sm:$0xff]
    %v189 = vld [vmem:[#allocation7 + $0x90] sm:$0xff]
    %v190 = vld [vmem:[#allocation7 + $0x98] sm:$0xff]
    %v191 = vld [vmem:[#allocation7 + $0xa0] sm:$0xff]
    %v192 = vld [vmem:[#allocation7 + $0xa8] sm:$0xff]
    %v193 = vld [vmem:[#allocation7 + $0xb0] sm:$0xff]
    %v194 = vld [vmem:[#allocation7 + $0xb8] sm:$0xff]
    %v195 = vld [vmem:[#allocation7 + $0xc0] sm:$0xff]
    %v196 = vld [vmem:[#allocation7 + $0xc8] sm:$0xff]
    %v197 = vld [vmem:[#allocation7 + $0xd0] sm:$0xff]
    %v198 = vld [vmem:[#allocation7 + $0xd8] sm:$0xff]
    %v199 = vld [vmem:[#allocation7 + $0xe0] sm:$0xff]
    %v200 = vld [vmem:[#allocation7 + $0xe8] sm:$0xff]
    %v201 = vld [vmem:[#allocation7 + $0xf0] sm:$0xff]
    %v202 = vld [vmem:[#allocation7 + $0xf8] sm:$0xff]
    %v203 = vld [vmem:[%s4] sm:$0x1]
    %v205 = vperm.slane %v203, 0
    %207 = vmatpush.msra.mxu0 %v186
    %208 = vmatpush.msra.mxu0 %v185
    %209 = vmatpush.msra.mxu0 %v184
    %210 = vmatpush.msra.mxu0 %v183
    %211 = vmatpush.msra.mxu0 %v182
    %212 = vmatpush.msra.mxu0 %v181
    %213 = vmatpush.msra.mxu0 %v180
    %214 = vmatpush.msra.mxu0 %v179
    %215 = vmatpush.msra.mxu0 %v178
    %216 = vmatpush.msra.mxu0 %v177
    %217 = vmatpush.msra.mxu0 %v176
    %218 = vmatpush.msra.mxu0 %v175
    %219 = vmatpush.msra.mxu0 %v174
    %220 = vmatpush.msra.mxu0 %v173
    %221 = vmatpush.msra.mxu0 %v172
    %222 = vmatpush.msra.mxu0 %v171
    %223 = vmatmul.f32.gmra.mxu0 %v167
    %v224 = vpop.f32.mrf.mxu0
    %v225 = vadd.f32 %v205, %v224
    %226 = vmatmul.f32.gmra.mxu0 %v169
    %v227 = vpop.f32.mrf.mxu0
    %v228 = vadd.f32 %v205, %v227
    %229 = vdwg.mxu0
    %230 = vmatpush.msra.mxu0 %v202
    %231 = vmatpush.msra.mxu0 %v201
    %232 = vmatpush.msra.mxu0 %v200
    %233 = vmatpush.msra.mxu0 %v199
    %234 = vmatpush.msra.mxu0 %v198
    %235 = vmatpush.msra.mxu0 %v197
    %236 = vmatpush.msra.mxu0 %v196
    %237 = vmatpush.msra.mxu0 %v195
    %238 = vmatpush.msra.mxu0 %v194
    %239 = vmatpush.msra.mxu0 %v193
    %240 = vmatpush.msra.mxu0 %v192
    %241 = vmatpush.msra.mxu0 %v191
    %242 = vmatpush.msra.mxu0 %v190
    %243 = vmatpush.msra.mxu0 %v189
    %244 = vmatpush.msra.mxu0 %v188
    %245 = vmatpush.msra.mxu0 %v187
    %246 = vmatmul.f32.gmra.mxu0 %v168
    %v247 = vpop.f32.mrf.mxu0
    %v248 = vadd.f32 %v225, %v247
    %249 = vmatmul.f32.gmra.mxu0 %v170
    %v250 = vpop.f32.mrf.mxu0
    %v251 = vadd.f32 %v228, %v250
    %252 = vdwg.mxu0
    %v253 = vmax.f32 %v248, 0.0
    %v254 = vmax.f32 %v251, 0.0
    %v255 = vld [vmem:[%s5] sm:$0x3]
    %v256 = vld [vmem:[%s6] sm:$0x1]
    %v257 = vperm.slane %v255, 0
    %v258 = vmul.f32 %v253, %v257
    %v259 = vmul.f32 %v254, %v257
    %260 = vadd.xlane.f32.xlu0 %v258
    %v261 = vpop.xlane.xlu0 %260
    %262 = vadd.xlane.f32.xlu0 %v259
    %v263 = vpop.xlane.xlu0 %262
    %v265 = vperm.slane %v256, 0
    %v267 = vadd.f32 %v261, %v265
    %v268 = vadd.f32 %v263, %v265
    %vm269 = vcmask 7168
    %270 = vst.msk [vmem:[%s7] sm:$0xff] %vm269, %v267
    %271 = vst.msk [vmem:[%s7 + $0x8] sm:$0xff] %vm269, %v268
    %v272 = vperm.slane %v255, 1
    %v273 = vmul.f32 %v253, %v272
    %v274 = vmul.f32 %v254, %v272
    %275 = vadd.xlane.f32.xlu0 %v273
    %v276 = vpop.xlane.xlu0 %275
    %277 = vadd.xlane.f32.xlu0 %v274
    %v278 = vpop.xlane.xlu0 %277
    %v279 = vadd.f32 %v276, %v265
    %v280 = vadd.f32 %v278, %v265
    %vm281 = vcmask 15368
    %282 = vst.msk [vmem:[%s7] sm:$0xff] %vm281, %v279
    %283 = vst.msk [vmem:[%s7 + $0x8] sm:$0xff] %vm281, %v280
    // Predicated region
    $region46: #{tpu_custom_call.1} parent=1 // pred_check
      _
    $region47: #{tpu_custom_call.1} parent=1 // pred_check_branch
      %285 = sbr.rel (0) target = $region49
    $region48: #{tpu_custom_call.1} parent=1 // pred_region
      _
    $region49: #{tpu_custom_call.1} parent=1 // pred_fallthru
      _
    // Predicated region
    $region50: #{tpu_custom_call.1} parent=1 // pred_check
      _
    $region51: #{tpu_custom_call.1} parent=1 // pred_check_branch
      %287 = sbr.rel (0) target = $region53
    $region52: #{tpu_custom_call.1} parent=1 // pred_region
      _
    $region53: #{tpu_custom_call.1} parent=1 // pred_fallthru
      _
    %288 = vsyncpa [#allocation3], 1
    %289 = vsyncpa [#allocation5], 1
    %290 = vsyncpa [#allocation8], 1

</llo_original>
